<compile_context>
chip_gen: v5e
topology: v5e:2x2
jax: 0.10.0
libtpu: 0.0.40
codegen_flags: <defaults>
</compile_context>

<pallas_src>
import jax
import jax.numpy as jnp
from jax.experimental import pallas as pl
from jax.experimental.pallas import tpu as pltpu

SUB = 8  # sublanes per vreg


def _logreg_kernel(w_ref, b_ref, x_ref, o_ref):
    # w_ref: SMEM (IN,) f32      b_ref: SMEM (1,) f32
    # x_ref: VMEM (IN, 8, TL) f32 (features, sublanes, lane-tile)
    # o_ref: VMEM (8, TL) f32     (lane-dense, full-occupancy output tile)
    in_features = x_ref.shape[0]

    # z = b + sum_j w[j] * x[j]  -- VPU scalar-broadcast MACs on (8, TL)
    # vregs at full occupancy; per-row loads keep vreg pressure low.
    z = jnp.full(o_ref.shape, b_ref[0], dtype=jnp.float32)
    for j in range(in_features):
        z = z + w_ref[j] * x_ref[j]

    # Exact sigmoid with a single EUP transcendental per element.
    o_ref[...] = 0.5 * jnp.tanh(0.5 * z) + 0.5


def logistic_regression(x, weight, bias, *, tl=8192):
    """x: [B, 10] f32, weight: [1, 10] f32, bias: [1] f32 -> [B, 1] f32.

    tl = lanes per grid step (multiple of 128); each step processes
    8 * tl samples (default 64K), sized to fit the 16 MiB scoped-VMEM
    default on v5e and leave both v7x TensorCores busy for large B.
    """
    B, IN = x.shape
    OUT = weight.shape[0]
    assert OUT == 1, "LogisticRegression has a single output unit"

    # Pad the batch to a multiple of 8*128 = 1024 so it folds onto full
    # (8, 128) vregs; for larger batches also make it a multiple of the
    # per-step tile so the grid divides evenly.
    unit = SUB * 128
    Bp = ((B + unit - 1) // unit) * unit
    L = Bp // SUB                      # total lanes (multiple of 128)
    if L <= tl:
        TL = L                         # single grid step
    else:
        TL = tl
        L = ((L + TL - 1) // TL) * TL
        Bp = L * SUB

    # Layout plumbing in the wrapper: feature-major + fold batch onto
    # (sublane, lane).  TODO(synk): produce x feature-major upstream (or fuse
    # this transpose/pad into the producer) to avoid this extra HBM pass.
    xt = x.astype(jnp.float32).T                       # [IN, B]
    if Bp != B:
        xt = jnp.pad(xt, ((0, 0), (0, Bp - B)))        # [IN, Bp]
    xt = xt.reshape(IN, SUB, L)                        # [IN, 8, L]

    w_flat = weight.reshape(IN).astype(jnp.float32)
    b_flat = bias.reshape(OUT).astype(jnp.float32)

    out = pl.pallas_call(
        _logreg_kernel,
        out_shape=jax.ShapeDtypeStruct((SUB, L), jnp.float32),
        grid_spec=pltpu.PrefetchScalarGridSpec(
            num_scalar_prefetch=0,
            grid=(L // TL,),
            in_specs=[
                # tiny parameters -> SMEM, resident for the whole grid
                pl.BlockSpec(memory_space=pltpu.MemorySpace.SMEM),   # weight
                pl.BlockSpec(memory_space=pltpu.MemorySpace.SMEM),   # bias
                # x tiles: features leading, (8, TL) on (sublane, lane)
                pl.BlockSpec((IN, SUB, TL), lambda i: (0, 0, i)),
            ],
            out_specs=pl.BlockSpec((SUB, TL), lambda i: (0, i)),
        ),
        compiler_params=pltpu.CompilerParams(
            dimension_semantics=("parallel",),
        ),
        cost_estimate=pl.CostEstimate(
            flops=2 * IN * Bp + 3 * Bp,       # MACs + sigmoid mul/add
            transcendentals=Bp,               # one tanh per output
            bytes_accessed=(IN + 1) * 4 * Bp, # read x + write y
        ),
    )(w_flat, b_flat, xt)

    # Back to the PyTorch layout [B, 1].
    return out.reshape(Bp)[:B].reshape(B, OUT)


if __name__ == "__main__":
    key = jax.random.PRNGKey(0)
    k_x, k_w, k_b = jax.random.split(key, 3)

    B, IN, OUT = 8, 10, 1

    # Deterministic parameter init matching torch.nn.Linear default:
    # uniform(-1/sqrt(in_features), 1/sqrt(in_features))
    bound = 1.0 / jnp.sqrt(jnp.float32(IN))
    weight = jax.random.uniform(k_w, (OUT, IN), jnp.float32, -bound, bound)
    bias = jax.random.uniform(k_b, (OUT,), jnp.float32, -bound, bound)

    x = jax.random.normal(k_x, (B, IN), jnp.float32)

    y = logistic_regression(x, weight, bias)
    y = jax.block_until_ready(y)

    # Reference check against plain JAX (exact sigmoid formulation).
    y_ref = jax.nn.sigmoid(x @ weight.T + bias)
    assert y.shape == (B, OUT)
    assert jnp.allclose(y, y_ref, atol=1e-5), "mismatch vs reference"

    print("KERNEL_OK")
</pallas_src>

<mosaic_0001>
module attributes {stable_mosaic.version = 11 : i64} {
  func.func @_logreg_kernel(%arg0: i32, %arg1: memref<10xf32, #tpu.memory_space<smem>>, %arg2: memref<1xf32, #tpu.memory_space<smem>>, %arg3: memref<10x8x128xf32, #tpu.memory_space<vmem>>, %arg4: memref<8x128xf32, #tpu.memory_space<vmem>>) attributes {dimension_semantics = [#tpu.dimension_semantics<parallel>], iteration_bounds = array<i64: 1>, scalar_prefetch = 0 : i64, scratch_operands = 0 : i64, tpu.core_type = #tpu.core_type<tc>, window_params = [{transform_indices = @transform_0, window_bounds = array<i64: 10>}, {transform_indices = @transform_1, window_bounds = array<i64: 1>}, {transform_indices = @transform_2, window_bounds = array<i64: 10, 8, 128>}, {transform_indices = @transform_3, window_bounds = array<i64: 8, 128>}]} {
    %c0 = arith.constant 0 : index
    %0 = memref.load %arg2[%c0] : memref<1xf32, #tpu.memory_space<smem>>
    %1 = vector.broadcast %0 : f32 to vector<8x128xf32>
    %c0_0 = arith.constant 0 : index
    %2 = memref.load %arg1[%c0_0] : memref<10xf32, #tpu.memory_space<smem>>
    %c0_1 = arith.constant 0 : index
    %c0_2 = arith.constant 0 : index
    %c0_3 = arith.constant 0 : index
    %3 = vector.load %arg3[%c0_1, %c0_2, %c0_3] : memref<10x8x128xf32, #tpu.memory_space<vmem>>, vector<1x8x128xf32>
    %4 = vector.shape_cast %3 : vector<1x8x128xf32> to vector<8x128xf32>
    %5 = vector.broadcast %2 : f32 to vector<8x128xf32>
    %6 = arith.mulf %5, %4 : vector<8x128xf32>
    %7 = arith.addf %1, %6 : vector<8x128xf32>
    %c1 = arith.constant 1 : index
    %8 = memref.load %arg1[%c1] : memref<10xf32, #tpu.memory_space<smem>>
    %c1_4 = arith.constant 1 : index
    %c0_5 = arith.constant 0 : index
    %c0_6 = arith.constant 0 : index
    %9 = vector.load %arg3[%c1_4, %c0_5, %c0_6] : memref<10x8x128xf32, #tpu.memory_space<vmem>>, vector<1x8x128xf32>
    %10 = vector.shape_cast %9 : vector<1x8x128xf32> to vector<8x128xf32>
    %11 = vector.broadcast %8 : f32 to vector<8x128xf32>
    %12 = arith.mulf %11, %10 : vector<8x128xf32>
    %13 = arith.addf %7, %12 : vector<8x128xf32>
    %c2 = arith.constant 2 : index
    %14 = memref.load %arg1[%c2] : memref<10xf32, #tpu.memory_space<smem>>
    %c2_7 = arith.constant 2 : index
    %c0_8 = arith.constant 0 : index
    %c0_9 = arith.constant 0 : index
    %15 = vector.load %arg3[%c2_7, %c0_8, %c0_9] : memref<10x8x128xf32, #tpu.memory_space<vmem>>, vector<1x8x128xf32>
    %16 = vector.shape_cast %15 : vector<1x8x128xf32> to vector<8x128xf32>
    %17 = vector.broadcast %14 : f32 to vector<8x128xf32>
    %18 = arith.mulf %17, %16 : vector<8x128xf32>
    %19 = arith.addf %13, %18 : vector<8x128xf32>
    %c3 = arith.constant 3 : index
    %20 = memref.load %arg1[%c3] : memref<10xf32, #tpu.memory_space<smem>>
    %c3_10 = arith.constant 3 : index
    %c0_11 = arith.constant 0 : index
    %c0_12 = arith.constant 0 : index
    %21 = vector.load %arg3[%c3_10, %c0_11, %c0_12] : memref<10x8x128xf32, #tpu.memory_space<vmem>>, vector<1x8x128xf32>
    %22 = vector.shape_cast %21 : vector<1x8x128xf32> to vector<8x128xf32>
    %23 = vector.broadcast %20 : f32 to vector<8x128xf32>
    %24 = arith.mulf %23, %22 : vector<8x128xf32>
    %25 = arith.addf %19, %24 : vector<8x128xf32>
    %c4 = arith.constant 4 : index
    %26 = memref.load %arg1[%c4] : memref<10xf32, #tpu.memory_space<smem>>
    %c4_13 = arith.constant 4 : index
    %c0_14 = arith.constant 0 : index
    %c0_15 = arith.constant 0 : index
    %27 = vector.load %arg3[%c4_13, %c0_14, %c0_15] : memref<10x8x128xf32, #tpu.memory_space<vmem>>, vector<1x8x128xf32>
    %28 = vector.shape_cast %27 : vector<1x8x128xf32> to vector<8x128xf32>
    %29 = vector.broadcast %26 : f32 to vector<8x128xf32>
    %30 = arith.mulf %29, %28 : vector<8x128xf32>
    %31 = arith.addf %25, %30 : vector<8x128xf32>
    %c5 = arith.constant 5 : index
    %32 = memref.load %arg1[%c5] : memref<10xf32, #tpu.memory_space<smem>>
    %c5_16 = arith.constant 5 : index
    %c0_17 = arith.constant 0 : index
    %c0_18 = arith.constant 0 : index
    %33 = vector.load %arg3[%c5_16, %c0_17, %c0_18] : memref<10x8x128xf32, #tpu.memory_space<vmem>>, vector<1x8x128xf32>
    %34 = vector.shape_cast %33 : vector<1x8x128xf32> to vector<8x128xf32>
    %35 = vector.broadcast %32 : f32 to vector<8x128xf32>
    %36 = arith.mulf %35, %34 : vector<8x128xf32>
    %37 = arith.addf %31, %36 : vector<8x128xf32>
    %c6 = arith.constant 6 : index
    %38 = memref.load %arg1[%c6] : memref<10xf32, #tpu.memory_space<smem>>
    %c6_19 = arith.constant 6 : index
    %c0_20 = arith.constant 0 : index
    %c0_21 = arith.constant 0 : index
    %39 = vector.load %arg3[%c6_19, %c0_20, %c0_21] : memref<10x8x128xf32, #tpu.memory_space<vmem>>, vector<1x8x128xf32>
    %40 = vector.shape_cast %39 : vector<1x8x128xf32> to vector<8x128xf32>
    %41 = vector.broadcast %38 : f32 to vector<8x128xf32>
    %42 = arith.mulf %41, %40 : vector<8x128xf32>
    %43 = arith.addf %37, %42 : vector<8x128xf32>
    %c7 = arith.constant 7 : index
    %44 = memref.load %arg1[%c7] : memref<10xf32, #tpu.memory_space<smem>>
    %c7_22 = arith.constant 7 : index
    %c0_23 = arith.constant 0 : index
    %c0_24 = arith.constant 0 : index
    %45 = vector.load %arg3[%c7_22, %c0_23, %c0_24] : memref<10x8x128xf32, #tpu.memory_space<vmem>>, vector<1x8x128xf32>
    %46 = vector.shape_cast %45 : vector<1x8x128xf32> to vector<8x128xf32>
    %47 = vector.broadcast %44 : f32 to vector<8x128xf32>
    %48 = arith.mulf %47, %46 : vector<8x128xf32>
    %49 = arith.addf %43, %48 : vector<8x128xf32>
    %c8 = arith.constant 8 : index
    %50 = memref.load %arg1[%c8] : memref<10xf32, #tpu.memory_space<smem>>
    %c8_25 = arith.constant 8 : index
    %c0_26 = arith.constant 0 : index
    %c0_27 = arith.constant 0 : index
    %51 = vector.load %arg3[%c8_25, %c0_26, %c0_27] : memref<10x8x128xf32, #tpu.memory_space<vmem>>, vector<1x8x128xf32>
    %52 = vector.shape_cast %51 : vector<1x8x128xf32> to vector<8x128xf32>
    %53 = vector.broadcast %50 : f32 to vector<8x128xf32>
    %54 = arith.mulf %53, %52 : vector<8x128xf32>
    %55 = arith.addf %49, %54 : vector<8x128xf32>
    %c9 = arith.constant 9 : index
    %56 = memref.load %arg1[%c9] : memref<10xf32, #tpu.memory_space<smem>>
    %c9_28 = arith.constant 9 : index
    %c0_29 = arith.constant 0 : index
    %c0_30 = arith.constant 0 : index
    %57 = vector.load %arg3[%c9_28, %c0_29, %c0_30] : memref<10x8x128xf32, #tpu.memory_space<vmem>>, vector<1x8x128xf32>
    %58 = vector.shape_cast %57 : vector<1x8x128xf32> to vector<8x128xf32>
    %59 = vector.broadcast %56 : f32 to vector<8x128xf32>
    %60 = arith.mulf %59, %58 : vector<8x128xf32>
    %61 = arith.addf %55, %60 : vector<8x128xf32>
    %cst = arith.constant 5.000000e-01 : f32
    %62 = vector.broadcast %cst : f32 to vector<8x128xf32>
    %63 = arith.mulf %62, %61 : vector<8x128xf32>
    %64 = math.tanh %63 : vector<8x128xf32>
    %cst_31 = arith.constant 5.000000e-01 : f32
    %65 = vector.broadcast %cst_31 : f32 to vector<8x128xf32>
    %66 = arith.mulf %65, %64 : vector<8x128xf32>
    %cst_32 = arith.constant 5.000000e-01 : f32
    %67 = vector.broadcast %cst_32 : f32 to vector<8x128xf32>
    %68 = arith.addf %66, %67 : vector<8x128xf32>
    %c0_33 = arith.constant 0 : index
    %c0_34 = arith.constant 0 : index
    %69 = vector.load %arg4[%c0_33, %c0_34] : memref<8x128xf32, #tpu.memory_space<vmem>>, vector<8x128xf32>
    tpu.vector_store %arg4[%c0_33, %c0_34], %68 {strides = array<i32>} : memref<8x128xf32, #tpu.memory_space<vmem>>, vector<8x128xf32>,
    return
  }
  func.func @transform_0(%arg0: i32) -> i32 {
    %c0_i32 = arith.constant 0 : i32
    %c0_i32_0 = arith.constant 0 : i32
    return %c0_i32 : i32
  }
  func.func @transform_1(%arg0: i32) -> i32 {
    %c0_i32 = arith.constant 0 : i32
    %c0_i32_0 = arith.constant 0 : i32
    return %c0_i32 : i32
  }
  func.func @transform_2(%arg0: i32) -> (i32, i32, i32) {
    %c0_i32 = arith.constant 0 : i32
    %c0_i32_0 = arith.constant 0 : i32
    %c0_i32_1 = arith.constant 0 : i32
    return %c0_i32, %c0_i32_0, %arg0 : i32, i32, i32
  }
  func.func @transform_3(%arg0: i32) -> (i32, i32) {
    %c0_i32 = arith.constant 0 : i32
    %c0_i32_0 = arith.constant 0 : i32
    return %c0_i32, %arg0 : i32, i32
  }
}

</mosaic_0001>

<llo_original>
// kernel: tpu_custom_call.1
$region0: #{tpu_custom_call.1}
  #allocation0 [shape = 'u32[]', space=smem, size = 0x4, offset = 0x4, fixed_abs, tag = 'smem constant byte address 0x4 - core index']
  #allocation1 [shape = 'u32[72,128]{1,0:T(1,128)}', space=vmem, size = 0x9000, scoped, tag = 'internal scratch']
  #allocation2 [shape = 'f32[1]{0:T(128)S(6)}', space=smem, size = 0x200, scoped, tag = 'scoped memory for tpu_custom_call.1']
  %s0 = inlined_call_operand.vmem [shape: f32[10], index: 0, kind: input, shape index: {}]
  %s1 = inlined_call_operand.<no memory space> [shape: f32[1], index: 1, kind: input, shape index: {}]
  %s2 = inlined_call_operand.hbm [shape: f32[10,8,128], index: 2, kind: input, shape index: {}]
  %s3 = inlined_call_operand.hbm [shape: f32[8,128], index: 3, kind: output, shape index: {}]
  %s4 = sld [smem:[#allocation0]]
  $region30: #{tpu_custom_call.1} parent=0
    _
  %s6 = ssub.s32 1, %s4
  %s7 = scalar_select 0, %s6, %s4
  %8 = sst [smem:[#allocation2]] %s1
  $region1: #{tpu_custom_call.1} parent=0
    #allocation3 [shape = 'u8[512]{0}', space=smem, size = 0x200, scoped, tag = 'input window, operand 0, single buffered']
    #allocation4 [shape = 's32[1]{0}', space=sflag, size = 0x4, scoped, tag = 'scoped memory for tpu_custom_call.1']
    #allocation5 [shape = 's32[1]{0}', space=sflag, size = 0x4, scoped, tag = 'scoped memory for tpu_custom_call.1']
    #allocation6 [shape = 's32[1]{0}', space=sflag, size = 0x4, scoped, tag = 'scoped memory for tpu_custom_call.1']
    #allocation7 [shape = 'u8[40960]{0}', space=vmem, size = 0xa000, scoped, tag = 'input window, operand 2, single buffered']
    #allocation8 [shape = 'u8[4096]{0}', space=vmem, size = 0x1000, scoped, tag = 'output window, operand 0, single buffered']
    %9 = vsyncpa [#allocation6], 0
    %10 = vsyncpa [#allocation4], 0
    %11 = vsyncpa [#allocation5], 0
    // Predicated region
    $region2: #{tpu_custom_call.1} parent=1 // pred_check
      _
    $region3: #{tpu_custom_call.1} parent=1 // pred_check_branch
      %13 = sbr.rel (0) target = $region5
    $region4: #{tpu_custom_call.1} parent=1 // pred_region
      %15 = vsyncadd [#allocation6], 0
      %s17 = sshll.u32 %s0, 4
      %s18 = int_to_ptr.vmem [resolvable:$true] %s17
      %20 = dma.vmem_to_smem %s18, 16, [#allocation3], [#allocation6]
    $region5: #{tpu_custom_call.1} parent=1 // pred_fallthru
      _
    // Predicated region
    $region6: #{tpu_custom_call.1} parent=1 // pred_check
      _
    $region7: #{tpu_custom_call.1} parent=1 // pred_check_branch
      %22 = sbr.rel (0) target = $region9
    $region8: #{tpu_custom_call.1} parent=1 // pred_region
      _
    $region9: #{tpu_custom_call.1} parent=1 // pred_fallthru
      _
    // Predicated region
    $region10: #{tpu_custom_call.1} parent=1 // pred_check
      _
    $region11: #{tpu_custom_call.1} parent=1 // pred_check_branch
      %24 = sbr.rel (0) target = $region13
    $region12: #{tpu_custom_call.1} parent=1 // pred_region
      %26 = vsyncadd [#allocation4], 0
      %s27 = sshll.u32 %s2, 4
      %s28 = int_to_ptr.hbm [resolvable:$true] %s27
      %s29 = sshll.u32 [#allocation7], 4
      %s30 = int_to_ptr.vmem [resolvable:$true] %s29
      %35 = dma.hbm_to_vmem [thread:$0]  %s28, 1280, %s30, [#allocation4], 128, 128, 8
    $region13: #{tpu_custom_call.1} parent=1 // pred_fallthru
      _
    // Predicated region
    $region14: #{tpu_custom_call.1} parent=1 // pred_check
      _
    $region15: #{tpu_custom_call.1} parent=1 // pred_check_branch
      %37 = sbr.rel (0) target = $region17
    $region16: #{tpu_custom_call.1} parent=1 // pred_region
      %39 = dma.done [#allocation6], 16
    $region17: #{tpu_custom_call.1} parent=1 // pred_fallthru
      _
    // Predicated region
    $region18: #{tpu_custom_call.1} parent=1 // pred_check
      _
    $region19: #{tpu_custom_call.1} parent=1 // pred_check_branch
      %41 = sbr.rel (0) target = $region21
    $region20: #{tpu_custom_call.1} parent=1 // pred_region
      %43 = dma.done [#allocation4], 1280
    $region21: #{tpu_custom_call.1} parent=1 // pred_fallthru
      _
    %44 = sfence
    %s45 = sld [smem:[#allocation2]]
    %v46 = vstv %s45
    %s47 = sld [smem:[#allocation3]]
    %v48 = vld [vmem:[#allocation7] sm:$0xff]
    %v49 = vstv %s47
    %v50 = vmul.f32 %v49, %v48
    %v51 = vadd.f32 %v46, %v50
    %s52 = sld [smem:[#allocation3 + $0x1]]
    %s53 = scalar_lea.vmem [#allocation7], 8
    %v54 = vld [vmem:[%s53] sm:$0xff]
    %v55 = vstv %s52
    %v56 = vmul.f32 %v55, %v54
    %v57 = vadd.f32 %v51, %v56
    %s58 = sld [smem:[#allocation3 + $0x2]]
    %s59 = scalar_lea.vmem [#allocation7], 16
    %v60 = vld [vmem:[%s59] sm:$0xff]
    %v61 = vstv %s58
    %v62 = vmul.f32 %v61, %v60
    %v63 = vadd.f32 %v57, %v62
    %s64 = sld [smem:[#allocation3 + $0x3]]
    %s65 = scalar_lea.vmem [#allocation7], 24
    %v66 = vld [vmem:[%s65] sm:$0xff]
    %v67 = vstv %s64
    %v68 = vmul.f32 %v67, %v66
    %v69 = vadd.f32 %v63, %v68
    %s70 = sld [smem:[#allocation3 + $0x4]]
    %s71 = scalar_lea.vmem [#allocation7], 32
    %v72 = vld [vmem:[%s71] sm:$0xff]
    %v73 = vstv %s70
    %v74 = vmul.f32 %v73, %v72
    %v75 = vadd.f32 %v69, %v74
    %s76 = sld [smem:[#allocation3 + $0x5]]
    %s77 = scalar_lea.vmem [#allocation7], 40
    %v78 = vld [vmem:[%s77] sm:$0xff]
    %v79 = vstv %s76
    %v80 = vmul.f32 %v79, %v78
    %v81 = vadd.f32 %v75, %v80
    %s82 = sld [smem:[#allocation3 + $0x6]]
    %s83 = scalar_lea.vmem [#allocation7], 48
    %v84 = vld [vmem:[%s83] sm:$0xff]
    %v85 = vstv %s82
    %v86 = vmul.f32 %v85, %v84
    %v87 = vadd.f32 %v81, %v86
    %s88 = sld [smem:[#allocation3 + $0x7]]
    %s89 = scalar_lea.vmem [#allocation7], 56
    %v90 = vld [vmem:[%s89] sm:$0xff]
    %v91 = vstv %s88
    %v92 = vmul.f32 %v91, %v90
    %v93 = vadd.f32 %v87, %v92
    %s94 = sld [smem:[#allocation3 + $0x8]]
    %s95 = scalar_lea.vmem [#allocation7], 64
    %v96 = vld [vmem:[%s95] sm:$0xff]
    %v97 = vstv %s94
    %v98 = vmul.f32 %v97, %v96
    %v99 = vadd.f32 %v93, %v98
    %s100 = sld [smem:[#allocation3 + $0x9]]
    %s101 = scalar_lea.vmem [#allocation7], 72
    %v102 = vld [vmem:[%s101] sm:$0xff]
    %v103 = vstv %s100
    %v104 = vmul.f32 %v103, %v102
    %v105 = vadd.f32 %v99, %v104
    %v106 = vmul.f32 %v105, 0.5
    %v107 = vtanh.pop %v106
    %v108 = vmul.f32 %v107, 0.5
    %v109 = vadd.f32 %v108, 0.5
    %110 = vst [vmem:[#allocation8] sm:$0xff] %v109
    // Predicated region
    $region22: #{tpu_custom_call.1} parent=1 // pred_check
      _
    $region23: #{tpu_custom_call.1} parent=1 // pred_check_branch
      %112 = sbr.rel (0) target = $region25
    $region24: #{tpu_custom_call.1} parent=1 // pred_region
      %114 = vsyncadd [#allocation5], 0
      %s116 = sshll.u32 [#allocation8], 4
      %s117 = int_to_ptr.vmem [resolvable:$true] %s116
      %s118 = sshll.u32 %s3, 4
      %s119 = int_to_ptr.hbm [resolvable:$true] %s118
      %121 = dma.vmem_to_hbm [thread:$0]  %s117, 128, %s119, [#allocation5]
    $region25: #{tpu_custom_call.1} parent=1 // pred_fallthru
      _
    // Predicated region
    $region26: #{tpu_custom_call.1} parent=1 // pred_check
      _
    $region27: #{tpu_custom_call.1} parent=1 // pred_check_branch
      %123 = sbr.rel (0) target = $region29
    $region28: #{tpu_custom_call.1} parent=1 // pred_region
      %125 = dma.done [#allocation5], 128
    $region29: #{tpu_custom_call.1} parent=1 // pred_fallthru
      _
    %126 = vsyncpa [#allocation4], 1
    %127 = vsyncpa [#allocation5], 1
    %128 = vsyncpa [#allocation6], 1

</llo_original>
